<compile_context>
chip_gen: v6e
topology: v6e:2x2x1
jax: 0.10.0
libtpu: 0.0.40
codegen_flags: <defaults>
</compile_context>

<pallas_src>
from math import log

import jax
import jax.numpy as jnp
from jax.experimental import pallas as pl
from jax.experimental.pallas import tpu as pltpu

LANES = 128
SUBLANES = 8
LN10 = log(10.0)
NUM_METRICS = 5
NCORES = 2              # leading "parallel" grid axis (v7x has 2 TensorCores)
MAX_TILE_ROWS = 4096    # 4096*128*4B = 2 MiB per input per pipeline buffer


def _round_up(v, m):
    return ((v + m - 1) // m) * m


def _depth_metrics_kernel(x_ref, y_ref, acc_ref):
    """acc_ref: (NUM_METRICS, LANES) lane-parallel accumulator, resident per core."""
    @pl.when(pl.program_id(1) == 0)
    def _():
        acc_ref[...] = jnp.zeros_like(acc_ref)

    x = x_ref[...].astype(jnp.float32)
    y = y_ref[...].astype(jnp.float32)

    diff = x - y
    adiff = jnp.abs(diff)
    r = x / y                      # single divide; everything else derives from r
    log_r = jnp.log(r)             # single transcendental
    d1 = jnp.logical_and(r < jnp.float32(1.25),
                         r > jnp.float32(1.0 / 1.25)).astype(jnp.float32)

    # Reduce only over the row (sublane-tiled) axis; keep lanes parallel.
    partials = jnp.concatenate(
        [jnp.sum(adiff, axis=0, keepdims=True),            # MAE numerator
         jnp.sum(diff * diff, axis=0, keepdims=True),      # RMSE numerator
         jnp.sum(jnp.abs(r - 1.0), axis=0, keepdims=True),  # AbsRel numerator
         jnp.sum(jnp.abs(log_r), axis=0, keepdims=True),    # Log10 numerator (x ln10)
         jnp.sum(d1, axis=0, keepdims=True)],               # Delta1 count
        axis=0)                                             # (NUM_METRICS, LANES)
    acc_ref[...] += partials


def testing_losses(input_nchw, target_nchw):
    """Pallas equivalent of TestingLosses.forward(input, target) -> (5,)."""
    assert input_nchw.shape == target_nchw.shape
    x = input_nchw.reshape(-1)
    y = target_nchw.reshape(-1)
    n = x.size

    # Tiling: rows of 128 lanes, split across NCORES, large row tiles per step.
    rows = -(-n // LANES)
    tile_rows = max(SUBLANES,
                    min(MAX_TILE_ROWS, _round_up(-(-rows // NCORES), SUBLANES)))
    steps = -(-rows // (NCORES * tile_rows))
    padded_rows = NCORES * steps * tile_rows
    pad = padded_rows * LANES - n

    if pad:
        # Neutral padding: x = y = 1 contributes 0 to every sum except the
        # Delta1 count (+1 per padded element), which is corrected below.
        fill = jnp.ones((pad,), x.dtype)
        x = jnp.concatenate([x, fill])
        y = jnp.concatenate([y, fill])
    x2 = x.reshape(padded_rows, LANES)
    y2 = y.reshape(padded_rows, LANES)

    tile_spec = pl.BlockSpec((tile_rows, LANES), lambda c, i: (c * steps + i, 0))
    out_spec = pl.BlockSpec((None, NUM_METRICS, LANES), lambda c, i: (c, 0, 0))

    # 2 inputs x 2 pipeline buffers x tile, plus headroom; safe on v5e/v6e/v7x.
    tile_bytes = tile_rows * LANES * 4
    vmem_limit = int(min(max(4 * tile_bytes + (4 << 20), 32 << 20), 64 << 20))

    sums = pl.pallas_call(
        _depth_metrics_kernel,
        out_shape=jax.ShapeDtypeStruct((NCORES, NUM_METRICS, LANES), jnp.float32),
        grid_spec=pltpu.PrefetchScalarGridSpec(
            num_scalar_prefetch=0,
            grid=(NCORES, steps),
            in_specs=[tile_spec, tile_spec],
            out_specs=out_spec,
        ),
        compiler_params=pltpu.CompilerParams(
            dimension_semantics=("parallel", "arbitrary"),
            vmem_limit_bytes=vmem_limit),
    )(x2, y2)

    # Final tiny reduction + normalization on the host/XLA side.
    totals = jnp.sum(sums, axis=(0, 2))          # (NUM_METRICS,)
    inv_n = jnp.float32(1.0 / n)
    mae = totals[0] * inv_n
    rmse = jnp.sqrt(totals[1] * inv_n)
    absrel = totals[2] * inv_n
    log10 = totals[3] * jnp.float32(1.0 / (n * LN10))
    d1 = (totals[4] - jnp.float32(pad)) * inv_n  # remove padded-element counts
    return jnp.stack([mae, rmse, absrel, log10, d1])


def _reference(x, y):
    x = x.astype(jnp.float32).reshape(-1)
    y = y.astype(jnp.float32).reshape(-1)
    adiff = jnp.abs(x - y)
    mae = jnp.mean(adiff)
    rmse = jnp.sqrt(jnp.mean((x - y) ** 2))
    absrel = jnp.mean(adiff / y)
    log10 = jnp.mean(jnp.abs(jnp.log(x) - jnp.log(y)) / LN10)
    d1 = jnp.mean((jnp.maximum(x / y, y / x) < 1.25).astype(jnp.float32))
    return jnp.stack([mae, rmse, absrel, log10, d1])


if __name__ == "__main__":
    key = jax.random.PRNGKey(0)
    k1, k2, k3, k4 = jax.random.split(key, 4)

    # Main test: NCHW depth maps, positive values so AbsRel/log10/delta are defined.
    shape = (2, 4, 16, 16)
    inp = jax.random.uniform(k1, shape, jnp.float32, minval=0.5, maxval=2.0)
    tgt = jax.random.uniform(k2, shape, jnp.float32, minval=0.5, maxval=2.0)

    out = jax.block_until_ready(testing_losses(inp, tgt))
    ref = jax.block_until_ready(_reference(inp, tgt))
    assert out.shape == (NUM_METRICS,)
    assert bool(jnp.all(jnp.isfinite(out)))
    assert bool(jnp.allclose(out, ref, rtol=1e-5, atol=1e-5)), (out, ref)

    # Ragged shape (not a multiple of 1024 elements) exercises the padding path.
    shape2 = (1, 1, 13, 17)
    inp2 = jax.random.uniform(k3, shape2, jnp.float32, minval=0.5, maxval=2.0)
    tgt2 = jax.random.uniform(k4, shape2, jnp.float32, minval=0.5, maxval=2.0)
    out2 = jax.block_until_ready(testing_losses(inp2, tgt2))
    ref2 = jax.block_until_ready(_reference(inp2, tgt2))
    assert bool(jnp.allclose(out2, ref2, rtol=1e-5, atol=1e-5)), (out2, ref2)

    print("KERNEL_OK")
</pallas_src>

<mosaic_0001>
module attributes {stable_mosaic.version = 11 : i64} {
  func.func @_depth_metrics_kernel(%arg0: i32, %arg1: i32, %arg2: memref<8x128xf32, #tpu.memory_space<vmem>>, %arg3: memref<8x128xf32, #tpu.memory_space<vmem>>, %arg4: memref<1x5x128xf32, #tpu.memory_space<vmem>>) attributes {dimension_semantics = [#tpu.dimension_semantics<parallel>, #tpu.dimension_semantics<arbitrary>], iteration_bounds = array<i64: 2, 1>, scalar_prefetch = 0 : i64, scratch_operands = 0 : i64, tpu.core_type = #tpu.core_type<tc>, window_params = [{transform_indices = @transform_0, window_bounds = array<i64: 8, 128>}, {transform_indices = @transform_1, window_bounds = array<i64: 8, 128>}, {transform_indices = @transform_2, window_bounds = array<i64: 1, 5, 128>}]} {
    %c0_i32 = arith.constant 0 : i32
    %0 = arith.cmpi eq, %arg1, %c0_i32 : i32
    %1 = arith.extui %0 : i1 to i32
    %c0_i32_0 = arith.constant 0 : i32
    %2 = arith.cmpi ne, %1, %c0_i32_0 : i32
    scf.if %2 {
      %cst_17 = arith.constant 0.000000e+00 : f32
      %38 = vector.broadcast %cst_17 : f32 to vector<5x128xf32>
      %c0_18 = arith.constant 0 : index
      %c0_19 = arith.constant 0 : index
      %c0_20 = arith.constant 0 : index
      %39 = vector.load %arg4[%c0_18, %c0_19, %c0_20] : memref<1x5x128xf32, #tpu.memory_space<vmem>>, vector<1x5x128xf32>
      %40 = vector.shape_cast %39 : vector<1x5x128xf32> to vector<5x128xf32>
      %41 = vector.shape_cast %38 : vector<5x128xf32> to vector<1x5x128xf32>
      tpu.vector_store %arg4[%c0_18, %c0_19, %c0_20], %41 {strides = array<i32>} : memref<1x5x128xf32, #tpu.memory_space<vmem>>, vector<1x5x128xf32>,
    } else {
    }
    %c0 = arith.constant 0 : index
    %c0_1 = arith.constant 0 : index
    %3 = vector.load %arg2[%c0, %c0_1] : memref<8x128xf32, #tpu.memory_space<vmem>>, vector<8x128xf32>
    %c0_2 = arith.constant 0 : index
    %c0_3 = arith.constant 0 : index
    %4 = vector.load %arg3[%c0_2, %c0_3] : memref<8x128xf32, #tpu.memory_space<vmem>>, vector<8x128xf32>
    %5 = arith.subf %3, %4 : vector<8x128xf32>
    %6 = math.absf %5 : vector<8x128xf32>
    %7 = arith.divf %3, %4 : vector<8x128xf32>
    %8 = math.log %7 : vector<8x128xf32>
    %cst = arith.constant 1.250000e+00 : f32
    %9 = vector.broadcast %cst : f32 to vector<8x128xf32>
    %10 = arith.cmpf olt, %7, %9 : vector<8x128xf32>
    %cst_4 = arith.constant 8.000000e-01 : f32
    %11 = vector.broadcast %cst_4 : f32 to vector<8x128xf32>
    %12 = arith.cmpf ogt, %7, %11 : vector<8x128xf32>
    %13 = arith.andi %10, %12 : vector<8x128xi1>
    %14 = arith.extui %13 : vector<8x128xi1> to vector<8x128xi32>
    %15 = arith.sitofp %14 : vector<8x128xi32> to vector<8x128xf32>
    %cst_5 = arith.constant dense<0.000000e+00> : vector<128xf32>
    %16 = vector.multi_reduction <add>, %6, %cst_5 [0] : vector<8x128xf32> to vector<128xf32>
    %17 = vector.shape_cast %16 : vector<128xf32> to vector<1x128xf32>
    %18 = arith.mulf %5, %5 : vector<8x128xf32>
    %cst_6 = arith.constant dense<0.000000e+00> : vector<128xf32>
    %19 = vector.multi_reduction <add>, %18, %cst_6 [0] : vector<8x128xf32> to vector<128xf32>
    %20 = vector.shape_cast %19 : vector<128xf32> to vector<1x128xf32>
    %cst_7 = arith.constant 1.000000e+00 : f32
    %21 = vector.broadcast %cst_7 : f32 to vector<8x128xf32>
    %22 = arith.subf %7, %21 : vector<8x128xf32>
    %23 = math.absf %22 : vector<8x128xf32>
    %cst_8 = arith.constant dense<0.000000e+00> : vector<128xf32>
    %24 = vector.multi_reduction <add>, %23, %cst_8 [0] : vector<8x128xf32> to vector<128xf32>
    %25 = vector.shape_cast %24 : vector<128xf32> to vector<1x128xf32>
    %26 = math.absf %8 : vector<8x128xf32>
    %cst_9 = arith.constant dense<0.000000e+00> : vector<128xf32>
    %27 = vector.multi_reduction <add>, %26, %cst_9 [0] : vector<8x128xf32> to vector<128xf32>
    %28 = vector.shape_cast %27 : vector<128xf32> to vector<1x128xf32>
    %cst_10 = arith.constant dense<0.000000e+00> : vector<128xf32>
    %29 = vector.multi_reduction <add>, %15, %cst_10 [0] : vector<8x128xf32> to vector<128xf32>
    %30 = vector.shape_cast %29 : vector<128xf32> to vector<1x128xf32>
    %31 = tpu.concatenate %17, %20, %25, %28, %30 in 0 : vector<1x128xf32>, vector<1x128xf32>, vector<1x128xf32>, vector<1x128xf32>, vector<1x128xf32> -> vector<5x128xf32>
    %c0_11 = arith.constant 0 : index
    %c0_12 = arith.constant 0 : index
    %c0_13 = arith.constant 0 : index
    %32 = vector.load %arg4[%c0_11, %c0_12, %c0_13] : memref<1x5x128xf32, #tpu.memory_space<vmem>>, vector<1x5x128xf32>
    %33 = vector.shape_cast %32 : vector<1x5x128xf32> to vector<5x128xf32>
    %34 = arith.addf %33, %31 : vector<5x128xf32>
    %c0_14 = arith.constant 0 : index
    %c0_15 = arith.constant 0 : index
    %c0_16 = arith.constant 0 : index
    %35 = vector.load %arg4[%c0_14, %c0_15, %c0_16] : memref<1x5x128xf32, #tpu.memory_space<vmem>>, vector<1x5x128xf32>
    %36 = vector.shape_cast %35 : vector<1x5x128xf32> to vector<5x128xf32>
    %37 = vector.shape_cast %34 : vector<5x128xf32> to vector<1x5x128xf32>
    tpu.vector_store %arg4[%c0_14, %c0_15, %c0_16], %37 {strides = array<i32>} : memref<1x5x128xf32, #tpu.memory_space<vmem>>, vector<1x5x128xf32>,
    return
  }
  func.func @transform_0(%arg0: i32, %arg1: i32) -> (i32, i32) {
    %c1_i32 = arith.constant 1 : i32
    %0 = arith.muli %arg0, %c1_i32 : i32
    %1 = arith.addi %0, %arg1 : i32
    %c0_i32 = arith.constant 0 : i32
    %c0_i32_0 = arith.constant 0 : i32
    return %1, %c0_i32 : i32, i32
  }
  func.func @transform_1(%arg0: i32, %arg1: i32) -> (i32, i32) {
    %c1_i32 = arith.constant 1 : i32
    %0 = arith.muli %arg0, %c1_i32 : i32
    %1 = arith.addi %0, %arg1 : i32
    %c0_i32 = arith.constant 0 : i32
    %c0_i32_0 = arith.constant 0 : i32
    return %1, %c0_i32 : i32, i32
  }
  func.func @transform_2(%arg0: i32, %arg1: i32) -> (i32, i32, i32) {
    %c0_i32 = arith.constant 0 : i32
    %c0_i32_0 = arith.constant 0 : i32
    %c0_i32_1 = arith.constant 0 : i32
    return %arg0, %c0_i32, %c0_i32_0 : i32, i32, i32
  }
}

</mosaic_0001>

<llo_original>
// kernel: tpu_custom_call.1
$region0: #{tpu_custom_call.1}
  #allocation0 [shape = 'u32[]', space=smem, size = 0x4, offset = 0x4, fixed_abs, tag = 'smem constant byte address 0x4 - core index']
  #allocation1 [shape = 'u32[144,128]{1,0:T(1,128)}', space=vmem, size = 0x12000, scoped, tag = 'internal scratch']
  %s0 = inlined_call_operand.hbm [shape: f32[16,128], index: 0, kind: input, shape index: {}]
  %s1 = inlined_call_operand.hbm [shape: f32[16,128], index: 1, kind: input, shape index: {}]
  %s2 = inlined_call_operand.vmem [shape: f32[2,5,128], index: 2, kind: output, shape index: {}]
  %s3 = sld [smem:[#allocation0]]
  $region53: #{tpu_custom_call.1} parent=0
    _
  %s5 = ssub.s32 1, %s3
  %s6 = scalar_select 0, %s5, %s3
  $region1: #{tpu_custom_call.1} parent=0
    #allocation2 [shape = 'u8[8192]{0}', space=vmem, size = 0x2000, scoped, tag = 'input window, operand 0']
    #allocation3 [shape = 's32[2]{0}', space=sflag, size = 0x8, scoped, tag = 'scoped memory for tpu_custom_call.1']
    #allocation4 [shape = 'u8[8192]{0}', space=vmem, size = 0x2000, scoped, tag = 'input window, operand 1']
    #allocation5 [shape = 's32[2]{0}', space=sflag, size = 0x8, scoped, tag = 'scoped memory for tpu_custom_call.1']
    %7 = vsyncpa [#allocation3], 0
    %s8 = scalar_lea.sflag [#allocation3], 1
    %9 = vsyncpa %s8, 0
    %10 = vsyncpa [#allocation5], 0
    %s11 = scalar_lea.sflag [#allocation5], 1
    %12 = vsyncpa %s11, 0
    loop: start=0, step=1, limit=4
    $region2: #{tpu_custom_call.1} parent=1 // loop_pre_header
      _
    $region3: #{tpu_custom_call.1} parent=1 // loop_header
      %s14 = sphi 0, %s18
      %p15 = scmp.ge.s32.totalorder %s14, 4
      %s21 = sphi 0, %s33
      %s22 = sphi 0, %s29
      %s23 = sphi 0, %s21
      %s24 = sphi 0, %s22
      %s25 = sphi 0, %s23
      %s26 = sphi 0, %s24
      %s38 = sphi 0, %s40
      %s41 = sphi 0, %s38
      %s42 = sphi 0, %s41
      %s58 = sphi 0, %s42
      %s66 = sphi 0, %s68
      %s69 = sphi 0, %s66
      %s70 = sphi 0, %s69
      %s86 = sphi 0, %s70
      %s92 = sphi 0, %s94
      %s95 = sphi 0, %s92
      %s96 = sphi 0, %s95
      %s112 = sphi 0, %s96
    $region4: #{tpu_custom_call.1} parent=1 // loop_header_branch
      %17 = sbr.rel (%p15) target = $region8
    $region5: #{tpu_custom_call.1} parent=1 // loop_body
      %s19 = ssub.s32 %s14, 1
      %s20 = ssub.s32 %s14, 2
      %s27 = sadd.s32 1, %s22
      %p28 = scmp.ge.s32.totalorder %s27, 1
      %s29 = scalar_select %p28, 0, %s27
      %s30 = sadd.s32 1, %s21
      %s31 = scalar_select %p28, %s30, %s21
      %p32 = scmp.ge.s32.totalorder %s31, 2
      %s33 = scalar_select %p32, 0, %s31
      %s34 = sadd.s32 %s21, %s22
      %s35 = sadd.s32 %s33, %s29
      %s36 = ssub.s32 %s34, %s35
      %p37 = scmp.eq.s32.totalorder %s36, 0
      %s39 = sadd.s32 %s38, 1
      %s40 = scalar_select %p37, %s38, %s39
      %p43 = pneg %p37
      %p44 = scmp.eq.s32.totalorder %s14, 1
      %p45 = por %p43, %p44
      %p46 = scmp.ne.s32.totalorder %s38, %s41
      %p47 = scmp.eq.s32.totalorder %s14, 0
      %p48 = por %p46, %p47
      %p49 = scmp.ne.s32.totalorder %s38, %s41
      %p50 = scmp.eq.s32.totalorder %s19, 1
      %p51 = por %p49, %p50
      %p52 = scmp.ne.s32.totalorder %s41, %s42
      %p53 = scmp.eq.s32.totalorder %s19, 0
      %p54 = por %p52, %p53
      %p55 = scmp.ne.s32.totalorder %s41, %s42
      %p56 = scmp.eq.s32.totalorder %s20, 1
      %p57 = por %p55, %p56
      %p59 = scmp.ne.s32.totalorder %s42, %s58
      %p60 = scmp.eq.s32.totalorder %s20, 0
      %p61 = por %p59, %p60
      %s62 = sadd.s32 %s21, %s22
      %s63 = sadd.s32 %s33, %s29
      %s64 = ssub.s32 %s62, %s63
      %p65 = scmp.eq.s32.totalorder %s64, 0
      %s67 = sadd.s32 %s66, 1
      %s68 = scalar_select %p65, %s66, %s67
      %p71 = pneg %p65
      %p72 = scmp.eq.s32.totalorder %s14, 1
      %p73 = por %p71, %p72
      %p74 = scmp.ne.s32.totalorder %s66, %s69
      %p75 = scmp.eq.s32.totalorder %s14, 0
      %p76 = por %p74, %p75
      %p77 = scmp.ne.s32.totalorder %s66, %s69
      %p78 = scmp.eq.s32.totalorder %s19, 1
      %p79 = por %p77, %p78
      %p80 = scmp.ne.s32.totalorder %s69, %s70
      %p81 = scmp.eq.s32.totalorder %s19, 0
      %p82 = por %p80, %p81
      %p83 = scmp.ne.s32.totalorder %s69, %s70
      %p84 = scmp.eq.s32.totalorder %s20, 1
      %p85 = por %p83, %p84
      %p87 = scmp.ne.s32.totalorder %s70, %s86
      %p88 = scmp.eq.s32.totalorder %s20, 0
      %p89 = por %p87, %p88
      %s90 = ssub.s32 %s21, %s33
      %p91 = scmp.eq.s32.totalorder %s90, 0
      %s93 = sadd.s32 %s92, 1
      %s94 = scalar_select %p91, %s92, %s93
      %p97 = pneg %p91
      %p98 = scmp.eq.s32.totalorder %s14, 1
      %p99 = por %p97, %p98
      %p100 = scmp.ne.s32.totalorder %s92, %s95
      %p101 = scmp.eq.s32.totalorder %s14, 0
      %p102 = por %p100, %p101
      %p103 = scmp.ne.s32.totalorder %s92, %s95
      %p104 = scmp.eq.s32.totalorder %s19, 1
      %p105 = por %p103, %p104
      %p106 = scmp.ne.s32.totalorder %s95, %s96
      %p107 = scmp.eq.s32.totalorder %s19, 0
      %p108 = por %p106, %p107
      %p109 = scmp.ne.s32.totalorder %s95, %s96
      %p110 = scmp.eq.s32.totalorder %s20, 1
      %p111 = por %p109, %p110
      %p113 = scmp.ne.s32.totalorder %s96, %s112
      %p114 = scmp.eq.s32.totalorder %s20, 0
      %p115 = por %p113, %p114
      %p116 = scmp.le.s32.totalorder 1, %s14
      %p117 = scmp.lt.s32.totalorder %s14, 3
      %p118 = pnand %p116, %p117
      %p119 = pneg %p118
      // Predicated region
      $region9: #{tpu_custom_call.1} parent=5 // pred_check
        _
      $region10: #{tpu_custom_call.1} parent=5 // pred_check_branch
        %121 = sbr.rel (%p118) target = $region12
      $region11: #{tpu_custom_call.1} parent=5 // pred_region
        %s122 = ssub.s32 %s14, 1
      $region12: #{tpu_custom_call.1} parent=5 // pred_fallthru
        _
      %p123 = scmp.lt.s32.totalorder %s14, 2
      // Predicated region
      $region13: #{tpu_custom_call.1} parent=5 // pred_check
        %p124 = pneg %p123
      $region14: #{tpu_custom_call.1} parent=5 // pred_check_branch
        %126 = sbr.rel (%p124) target = $region16
      $region15: #{tpu_custom_call.1} parent=5 // pred_region
        // Predicated region
        $region17: #{tpu_custom_call.1} parent=15 // pred_check
          %p127 = pneg %p48
        $region18: #{tpu_custom_call.1} parent=15 // pred_check_branch
          %129 = sbr.rel (%p127) target = $region20
        $region19: #{tpu_custom_call.1} parent=15 // pred_region
          %s130 = sand.u32 %s38, 1
          %s131 = scalar_lea.sflag [#allocation3], %s130
          %s132 = sand.u32 %s38, 1
          %s133 = smul.addr %s132, 8
          %s134 = scalar_lea.vmem [#allocation2], %s133
          %s135 = sadd.s32 %s21, %s22
          %s137 = ssub.s32 128, 128
          %138 = vsyncadd %s131, %s137
          %s139 = smul.addr %s135, 128
          %s140 = scalar_lea.hbm %s0, %s139
          %s142 = sshll.u32 %s134, 4
          %s143 = int_to_ptr.vmem [resolvable:$true] %s142
          %145 = dma.hbm_to_vmem [thread:$0]  %s140, 128, %s143, %s131
        $region20: #{tpu_custom_call.1} parent=15 // pred_fallthru
          _
        // Predicated region
        $region21: #{tpu_custom_call.1} parent=15 // pred_check
          %p146 = pneg %p76
        $region22: #{tpu_custom_call.1} parent=15 // pred_check_branch
          %148 = sbr.rel (%p146) target = $region24
        $region23: #{tpu_custom_call.1} parent=15 // pred_region
          %s149 = sand.u32 %s66, 1
          %s150 = scalar_lea.sflag [#allocation5], %s149
          %s151 = sand.u32 %s66, 1
          %s152 = smul.addr %s151, 8
          %s153 = scalar_lea.vmem [#allocation4], %s152
          %s154 = sadd.s32 %s21, %s22
          %s156 = ssub.s32 128, 128
          %157 = vsyncadd %s150, %s156
          %s158 = smul.addr %s154, 128
          %s159 = scalar_lea.hbm %s1, %s158
          %s161 = sshll.u32 %s153, 4
          %s162 = int_to_ptr.vmem [resolvable:$true] %s161
          %164 = dma.hbm_to_vmem [thread:$0]  %s159, 128, %s162, %s150
        $region24: #{tpu_custom_call.1} parent=15 // pred_fallthru
          _
      $region16: #{tpu_custom_call.1} parent=5 // pred_fallthru
        _
      %p165 = scmp.le.s32.totalorder 1, %s14
      %p166 = scmp.lt.s32.totalorder %s14, 3
      %p167 = pnand %p165, %p166
      %p168 = pneg %p167
      // Predicated region
      $region25: #{tpu_custom_call.1} parent=5 // pred_check
        _
      $region26: #{tpu_custom_call.1} parent=5 // pred_check_branch
        %170 = sbr.rel (%p167) target = $region28
      $region27: #{tpu_custom_call.1} parent=5 // pred_region
        %s171 = ssub.s32 %s14, 1
        %s172 = sand.u32 %s41, 1
        %s173 = scalar_lea.sflag [#allocation3], %s172
        %s174 = sand.u32 %s41, 1
        %s175 = smul.addr %s174, 8
        %s176 = scalar_lea.vmem [#allocation2], %s175
        // Predicated region
        $region29: #{tpu_custom_call.1} parent=27 // pred_check
          %p177 = pneg %p54
        $region30: #{tpu_custom_call.1} parent=27 // pred_check_branch
          %179 = sbr.rel (%p177) target = $region32
        $region31: #{tpu_custom_call.1} parent=27 // pred_region
          %180 = dma.done %s173, 128
        $region32: #{tpu_custom_call.1} parent=27 // pred_fallthru
          _
        %s181 = sand.u32 %s69, 1
        %s182 = scalar_lea.sflag [#allocation5], %s181
        %s183 = sand.u32 %s69, 1
        %s184 = smul.addr %s183, 8
        %s185 = scalar_lea.vmem [#allocation4], %s184
        // Predicated region
        $region33: #{tpu_custom_call.1} parent=27 // pred_check
          %p186 = pneg %p82
        $region34: #{tpu_custom_call.1} parent=27 // pred_check_branch
          %188 = sbr.rel (%p186) target = $region36
        $region35: #{tpu_custom_call.1} parent=27 // pred_region
          %189 = dma.done %s182, 128
        $region36: #{tpu_custom_call.1} parent=27 // pred_fallthru
          _
        %s190 = sand.u32 %s41, 1
        %s191 = scalar_lea.sflag [#allocation3], %s190
        %s192 = sand.u32 %s41, 1
        %s193 = smul.addr %s192, 8
        %s194 = scalar_lea.vmem [#allocation2], %s193
        %p195 = pneg %p54
        %p196 = pneg %p51
        %s197 = sand.u32 %s69, 1
        %s198 = scalar_lea.sflag [#allocation5], %s197
        %s199 = sand.u32 %s69, 1
        %s200 = smul.addr %s199, 8
        %s201 = scalar_lea.vmem [#allocation4], %s200
        %p202 = pneg %p82
        %p203 = pneg %p79
        %p204 = pneg %p108
        %p205 = pneg %p105
        %p206 = scmp.lt.s32.totalorder %s23, 1
        %s207 = scalar_select %p206, %s23, 1
        %s208 = smul.addr %s207, 8
        %s209 = scalar_lea.vmem %s2, %s208
        %s210 = sadd.s32 %s23, %s24
        %s211 = sadd.s32 %s23, %s24
        %p212 = scmp.lt.s32.totalorder %s23, 1
        %s213 = scalar_select %p212, %s23, 1
        %s214 = smul.addr %s213, 8
        %s215 = scalar_lea.vmem %s2, %s214
        %p216 = scmp.eq.s32.totalorder %s24, 0
        // Predicated region
        $region37: #{tpu_custom_call.1} parent=27 // pred_check
          %p217 = pneg %p216
        $region38: #{tpu_custom_call.1} parent=27 // pred_check_branch
          %219 = sbr.rel (%p217) target = $region40
        $region39: #{tpu_custom_call.1} parent=27 // pred_region
          %220 = vst [vmem:[%s215] sm:$0x1f] 0.0
        $region40: #{tpu_custom_call.1} parent=27 // pred_fallthru
          _
        %v221 = vld [vmem:[%s176] sm:$0xff]
        %v222 = vld [vmem:[%s185] sm:$0xff]
        %v223 = vsub.f32 %v221, %v222
        %v224 = vand.u32 2147483647, %v223
        %v225 = vrcp.pop %v222
        %v226 = vmul.f32 %v221, %v225
        %v227 = vlog2.pop %v226
        %v228 = vmul.f32 %v227, 0.6931472
        %vm229 = vcmp.lt.f32.partialorder %v226, 1.25
        %vm230 = vcmp.gt.f32.partialorder %v226, 0.8
        %vm231 = vmand %vm229, %vm230
        %v232 = vsel %vm231, 1, 0
        %v233 = vcvt.s32.f32 %v232
        %v234 = vrot.slane %v224, 4
        %v235 = vadd.f32 %v224, %v234
        %v236 = vrot.slane %v235, 2
        %v237 = vadd.f32 %v235, %v236
        %v238 = vrot.slane %v237, 1
        %v239 = vadd.f32 %v237, %v238
        %v240 = vmul.f32 %v223, %v223
        %v241 = vrot.slane %v240, 4
        %v242 = vadd.f32 %v240, %v241
        %v243 = vrot.slane %v242, 2
        %v244 = vadd.f32 %v242, %v243
        %v245 = vrot.slane %v244, 1
        %v246 = vadd.f32 %v244, %v245
        %v247 = vsub.f32 %v226, 1.0
        %v248 = vand.u32 2147483647, %v247
        %v249 = vrot.slane %v248, 4
        %v250 = vadd.f32 %v248, %v249
        %v251 = vrot.slane %v250, 2
        %v252 = vadd.f32 %v250, %v251
        %v253 = vrot.slane %v252, 1
        %v254 = vadd.f32 %v252, %v253
        %v255 = vand.u32 2147483647, %v228
        %v256 = vrot.slane %v255, 4
        %v257 = vadd.f32 %v255, %v256
        %v258 = vrot.slane %v257, 2
        %v259 = vadd.f32 %v257, %v258
        %v260 = vrot.slane %v259, 1
        %v261 = vadd.f32 %v259, %v260
        %v262 = vrot.slane %v233, 4
        %v263 = vadd.f32 %v233, %v262
        %v264 = vrot.slane %v263, 2
        %v265 = vadd.f32 %v263, %v264
        %v266 = vrot.slane %v265, 1
        %v267 = vadd.f32 %v265, %v266
        %vm268 = vcmask 1040384
        %v269 = vsel %vm268, %v239, %v246
        %vm270 = vcmask 1041408
        %v271 = vsel %vm270, %v269, %v254
        %vm272 = vcmask 1042432
        %v273 = vsel %vm272, %v271, %v261
        %vm274 = vcmask 1043456
        %v275 = vsel %vm274, %v273, %v267
        %v276 = vld [vmem:[%s215] sm:$0x1f]
        %v277 = vadd.f32 %v276, %v275
        %278 = vst [vmem:[%s215] sm:$0x1f] %v277
        %p279 = scmp.lt.s32.totalorder %s23, 1
        %s280 = scalar_select %p279, %s23, 1
        %s281 = smul.addr %s280, 8
        %s282 = scalar_lea.vmem %s2, %s281
        // Predicated region
        $region41: #{tpu_custom_call.1} parent=27 // pred_check
          %p283 = pneg %p105
        $region42: #{tpu_custom_call.1} parent=27 // pred_check_branch
          %285 = sbr.rel (%p283) target = $region44
        $region43: #{tpu_custom_call.1} parent=27 // pred_region
          _
        $region44: #{tpu_custom_call.1} parent=27 // pred_fallthru
          _
      $region28: #{tpu_custom_call.1} parent=5 // pred_fallthru
        _
      %p286 = scmp.le.s32.totalorder 2, %s14
      // Predicated region
      $region45: #{tpu_custom_call.1} parent=5 // pred_check
        %p287 = pneg %p286
      $region46: #{tpu_custom_call.1} parent=5 // pred_check_branch
        %289 = sbr.rel (%p287) target = $region48
      $region47: #{tpu_custom_call.1} parent=5 // pred_region
        %s290 = ssub.s32 %s14, 2
        // Predicated region
        $region49: #{tpu_custom_call.1} parent=47 // pred_check
          %p291 = pneg %p111
        $region50: #{tpu_custom_call.1} parent=47 // pred_check_branch
          %293 = sbr.rel (%p291) target = $region52
        $region51: #{tpu_custom_call.1} parent=47 // pred_region
          %p294 = scmp.lt.s32.totalorder %s25, 1
          %s295 = scalar_select %p294, %s25, 1
          %s296 = smul.addr %s295, 8
          %s297 = scalar_lea.vmem %s2, %s296
        $region52: #{tpu_custom_call.1} parent=47 // pred_fallthru
          _
      $region48: #{tpu_custom_call.1} parent=5 // pred_fallthru
        _
    $region6: #{tpu_custom_call.1} parent=1 // loop_footer
      %s18 = sadd.s32 1, %s14
    $region7: #{tpu_custom_call.1} parent=1 // loop_footer_branch
      %13 = sbr.rel target = $region3
    $region8: #{tpu_custom_call.1} parent=1 // loop_exit
      _
    %298 = vsyncpa [#allocation3], 1
    %s299 = scalar_lea.sflag [#allocation3], 1
    %300 = vsyncpa %s299, 1
    %301 = vsyncpa [#allocation5], 1
    %s302 = scalar_lea.sflag [#allocation5], 1
    %303 = vsyncpa %s302, 1

</llo_original>
